<compile_context>
chip_gen: v5e
topology: v5e:2x2
jax: 0.10.0
libtpu: 0.0.40
codegen_flags: <defaults>
</compile_context>

<pallas_src>
import jax
import jax.numpy as jnp
from jax.experimental import pallas as pl
from jax.experimental.pallas import tpu as pltpu


def _cls_pool_kernel(x_ref, o_ref):
    # x_ref: (tb, seq_blk, H) VMEM tile with the seq axis pinned to block 0.
    # o_ref: (tb, H) VMEM tile.
    o_ref[...] = x_ref[:, 0, :]


def cls_pooling(last_hidden_state, attention_mask=None):
    """Pallas equivalent of CLSPooling.forward.

    last_hidden_state: (B, S, H)
    attention_mask:    unused (kept for signature parity)
    returns:           (B, H) = last_hidden_state[:, 0]
    """
    B, S, H = last_hidden_state.shape
    dtype = last_hidden_state.dtype
    itemsize = jnp.dtype(dtype).itemsize

    # Minimum sublane multiple for the second-to-last (seq) axis of a block.
    sub = {4: 8, 2: 16, 1: 32}.get(itemsize, 8)
    # Pin the seq axis to its first min-tile block: we only ever DMA the first
    # `seq_blk` sequence rows per batch element instead of all S of them.
    seq_blk = S if S < sub else sub

    # Batch tile: keep the double-buffered input block well inside the scoped
    # VMEM default on every chip (v5e 16 MiB, v6e/v7x 32 MiB; v7x has only
    # 64 MiB physical VMEM per TC).
    vmem_budget = 4 * 1024 * 1024  # bytes per (single) input block
    bytes_per_batch_row = seq_blk * H * itemsize
    max_tb = max(1, vmem_budget // max(bytes_per_batch_row, 1))
    if B <= max_tb:
        tb = B
    else:
        # Multiple of 8 so the (tb, H) output block satisfies the (8, 128)
        # tiling rule even when the tail batch block is partial.
        tb = max(8, (max_tb // 8) * 8)
    grid = (pl.cdiv(B, tb),)

    # TODO(synk): for very small / ragged H (< 128) the output stores lower to
    # masked vst; padding H in the wrapper would make them lane-dense, but
    # typical hidden sizes (768/1024) are already multiples of 128.

    out_shape = jax.ShapeDtypeStruct((B, H), dtype)

    return pl.pallas_call(
        _cls_pool_kernel,
        out_shape=out_shape,
        grid=grid,
        in_specs=[pl.BlockSpec((tb, seq_blk, H), lambda i: (i, 0, 0))],
        out_specs=pl.BlockSpec((tb, H), lambda i: (i, 0)),
        compiler_params=pltpu.CompilerParams(
            dimension_semantics=("parallel",),
            vmem_limit_bytes=32 * 1024 * 1024,
        ),
        cost_estimate=pl.CostEstimate(
            flops=0,
            transcendentals=0,
            bytes_accessed=(B * seq_blk * H + B * H) * itemsize,
        ),
    )(last_hidden_state)


if __name__ == "__main__":
    key = jax.random.PRNGKey(0)
    B, S, H = 2, 8, 32
    k1, _ = jax.random.split(key)
    last_hidden_state = jax.random.normal(k1, (B, S, H), dtype=jnp.float32)
    attention_mask = jnp.ones((B, S), dtype=jnp.int32)

    out = cls_pooling(last_hidden_state, attention_mask)
    out = jax.block_until_ready(out)

    # Reference check against plain-JAX semantics of last_hidden_state[:, 0]
    ref = last_hidden_state[:, 0]
    assert out.shape == (B, H), out.shape
    assert jnp.allclose(out, ref), "mismatch vs reference"
    print("KERNEL_OK")
</pallas_src>

<mosaic_0001>
module attributes {stable_mosaic.version = 11 : i64} {
  func.func @_cls_pool_kernel(%arg0: i32, %arg1: memref<2x8x32xf32, #tpu.memory_space<vmem>>, %arg2: memref<2x32xf32, #tpu.memory_space<vmem>>) attributes {dimension_semantics = [#tpu.dimension_semantics<parallel>], iteration_bounds = array<i64: 1>, scalar_prefetch = 0 : i64, scratch_operands = 0 : i64, tpu.core_type = #tpu.core_type<tc>, window_params = [{transform_indices = @transform_0, window_bounds = array<i64: 2, 8, 32>}, {transform_indices = @transform_1, window_bounds = array<i64: 2, 32>}]} {
    %c0 = arith.constant 0 : index
    %c0_0 = arith.constant 0 : index
    %c0_1 = arith.constant 0 : index
    %0 = vector.load %arg1[%c0, %c0_0, %c0_1] : memref<2x8x32xf32, #tpu.memory_space<vmem>>, vector<2x1x32xf32>
    %1 = vector.shape_cast %0 : vector<2x1x32xf32> to vector<2x32xf32>
    %c0_2 = arith.constant 0 : index
    %c0_3 = arith.constant 0 : index
    %2 = vector.load %arg2[%c0_2, %c0_3] : memref<2x32xf32, #tpu.memory_space<vmem>>, vector<2x32xf32>
    tpu.vector_store %arg2[%c0_2, %c0_3], %1 {strides = array<i32>} : memref<2x32xf32, #tpu.memory_space<vmem>>, vector<2x32xf32>,
    return
  }
  func.func @transform_0(%arg0: i32) -> (i32, i32, i32) {
    %c0_i32 = arith.constant 0 : i32
    %c0_i32_0 = arith.constant 0 : i32
    %c0_i32_1 = arith.constant 0 : i32
    return %arg0, %c0_i32, %c0_i32_0 : i32, i32, i32
  }
  func.func @transform_1(%arg0: i32) -> (i32, i32) {
    %c0_i32 = arith.constant 0 : i32
    %c0_i32_0 = arith.constant 0 : i32
    return %arg0, %c0_i32 : i32, i32
  }
}

</mosaic_0001>

<llo_original>
// kernel: tpu_custom_call.1
$region0: #{tpu_custom_call.1}
  #allocation0 [shape = 'u32[]', space=smem, size = 0x4, offset = 0x4, fixed_abs, tag = 'smem constant byte address 0x4 - core index']
  #allocation1 [shape = 'u32[72,128]{1,0:T(1,128)}', space=vmem, size = 0x9000, scoped, tag = 'internal scratch']
  %s0 = inlined_call_operand.hbm [shape: f32[2,8,32], index: 0, kind: input, shape index: {}]
  %s1 = inlined_call_operand.hbm [shape: f32[2,32], index: 1, kind: output, shape index: {}]
  %s2 = sld [smem:[#allocation0]]
  $region18: #{tpu_custom_call.1} parent=0
    _
  %s4 = ssub.s32 1, %s2
  %s5 = scalar_select 0, %s4, %s2
  $region1: #{tpu_custom_call.1} parent=0
    #allocation2 [shape = 'u8[8192]{0}', space=vmem, size = 0x2000, scoped, tag = 'input window, operand 0, single buffered']
    #allocation3 [shape = 's32[1]{0}', space=sflag, size = 0x4, scoped, tag = 'scoped memory for tpu_custom_call.1']
    #allocation4 [shape = 's32[1]{0}', space=sflag, size = 0x4, scoped, tag = 'scoped memory for tpu_custom_call.1']
    #allocation5 [shape = 'u8[1024]{0}', space=vmem, size = 0x400, scoped, tag = 'output window, operand 0, single buffered']
    %6 = vsyncpa [#allocation3], 0
    %7 = vsyncpa [#allocation4], 0
    // Predicated region
    $region2: #{tpu_custom_call.1} parent=1 // pred_check
      _
    $region3: #{tpu_custom_call.1} parent=1 // pred_check_branch
      %9 = sbr.rel (0) target = $region5
    $region4: #{tpu_custom_call.1} parent=1 // pred_region
      %11 = vsyncadd [#allocation3], 0
      %s12 = sshll.u32 %s0, 4
      %s13 = int_to_ptr.hbm [resolvable:$true] %s12
      %s14 = sshll.u32 [#allocation2], 4
      %s15 = int_to_ptr.vmem [resolvable:$true] %s14
      %20 = dma.hbm_to_vmem [thread:$0]  %s13, 256, %s15, [#allocation3], 128, 128, 8
    $region5: #{tpu_custom_call.1} parent=1 // pred_fallthru
      _
    // Predicated region
    $region6: #{tpu_custom_call.1} parent=1 // pred_check
      _
    $region7: #{tpu_custom_call.1} parent=1 // pred_check_branch
      %22 = sbr.rel (0) target = $region9
    $region8: #{tpu_custom_call.1} parent=1 // pred_region
      %24 = dma.done [#allocation3], 256
    $region9: #{tpu_custom_call.1} parent=1 // pred_fallthru
      _
    %v25 = vld [vmem:[#allocation2] sm:$0x1]
    %v26 = vld [vmem:[#allocation2 + $0x8] sm:$0x1]
    %v29 = vrot.slane %v26, 7
    %vm30 = vcmask 1041409
    %v31 = vsel %vm30, %v29, %v25
    %vm33 = vcmask 254976
    %34 = vst.msk [vmem:[#allocation5] sm:$0x3] %vm33, %v31
    // Predicated region
    $region10: #{tpu_custom_call.1} parent=1 // pred_check
      _
    $region11: #{tpu_custom_call.1} parent=1 // pred_check_branch
      %36 = sbr.rel (0) target = $region13
    $region12: #{tpu_custom_call.1} parent=1 // pred_region
      %38 = vsyncadd [#allocation4], 0
      %s40 = sshll.u32 [#allocation5], 4
      %s41 = int_to_ptr.vmem [resolvable:$true] %s40
      %s42 = sshll.u32 %s1, 4
      %s43 = int_to_ptr.hbm [resolvable:$true] %s42
      %45 = dma.vmem_to_hbm [thread:$0]  %s41, 32, %s43, [#allocation4]
    $region13: #{tpu_custom_call.1} parent=1 // pred_fallthru
      _
    // Predicated region
    $region14: #{tpu_custom_call.1} parent=1 // pred_check
      _
    $region15: #{tpu_custom_call.1} parent=1 // pred_check_branch
      %47 = sbr.rel (0) target = $region17
    $region16: #{tpu_custom_call.1} parent=1 // pred_region
      %49 = dma.done [#allocation4], 32
    $region17: #{tpu_custom_call.1} parent=1 // pred_fallthru
      _
    %50 = vsyncpa [#allocation3], 1
    %51 = vsyncpa [#allocation4], 1

</llo_original>
